<compile_context>
chip_gen: v7x
topology: tpu7x:2x2x1
jax: 0.10.0
libtpu: 0.0.40
codegen_flags: <defaults>
</compile_context>

<pallas_src>
import jax
import jax.numpy as jnp
import numpy as np
from jax.experimental import pallas as pl
from jax.experimental.pallas import tpu as pltpu

_SMOOTH = 1e-9          # matches `1e-09 * torch.ones_like(intersect)`
_LANES = 1024           # lane-dense last dim (multiple of 128)
_TILE_ROWS_MAX = 512    # 512 x 1024 x 4 B = 2 MiB per block


def _dice_loss_kernel(x_ref, t_ref, o_ref):
    # Element-wise dice map on one (tile_rows, _LANES) slab.
    x = x_ref[...].astype(jnp.float32)
    t = t_ref[...].astype(jnp.float32)
    intersect = x * t
    z_sum = x * x
    y_sum = t * t
    smooth = jnp.float32(_SMOOTH)
    dice = (2.0 * intersect + smooth) / (z_sum + y_sum + smooth)
    o_ref[...] = (1.0 - dice).astype(o_ref.dtype)


def dice_loss_class(inputs, target, weight=None, softmax=False):
    """Pallas port of DiceLoss_class.forward.

    inputs : (N, C, H, W) scores (any float dtype)
    target : same shape as inputs (e.g. one-hot encoded labels)
    Returns the element-wise dice-loss map with the same shape/dtype as inputs.
    """
    if softmax:
        # TODO(synk): optional softmax=True path stays in XLA; the default
        # forward path (softmax=False) is fully handled by the Pallas kernel.
        inputs = jax.nn.softmax(inputs, axis=1)

    assert inputs.shape == target.shape, 'predict & target shape do not match'
    del weight  # computed but never used in the reference forward

    orig_shape = inputs.shape
    out_dtype = inputs.dtype

    x = inputs.reshape(-1)
    t = target.astype(inputs.dtype).reshape(-1)
    m = x.shape[0]

    lanes = _LANES
    rows = pl.cdiv(m, lanes)
    tile_rows = min(_TILE_ROWS_MAX, pl.cdiv(rows, 8) * 8)  # multiple of 8
    rows_pad = pl.cdiv(rows, tile_rows) * tile_rows
    m_pad = rows_pad * lanes
    if m_pad != m:
        # Pad with zeros; padded lanes produce dice = 0 and are sliced away.
        x = jnp.pad(x, (0, m_pad - m))
        t = jnp.pad(t, (0, m_pad - m))
    x2 = x.reshape(rows_pad, lanes)
    t2 = t.reshape(rows_pad, lanes)

    grid = (rows_pad // tile_rows,)

    out = pl.pallas_call(
        _dice_loss_kernel,
        out_shape=jax.ShapeDtypeStruct((rows_pad, lanes), out_dtype),
        grid_spec=pltpu.PrefetchScalarGridSpec(
            num_scalar_prefetch=0,
            grid=grid,
            in_specs=[
                pl.BlockSpec((tile_rows, lanes), lambda i: (i, 0)),
                pl.BlockSpec((tile_rows, lanes), lambda i: (i, 0)),
            ],
            out_specs=pl.BlockSpec((tile_rows, lanes), lambda i: (i, 0)),
        ),
        compiler_params=pltpu.CompilerParams(
            dimension_semantics=("parallel",),
            vmem_limit_bytes=32 * 1024 * 1024,
        ),
    )(x2, t2)

    return out.reshape(-1)[:m].reshape(orig_shape)


def _dice_loss_ref(inputs, target, softmax=False):
    """Pure-JAX reference mirroring DiceLoss_class.forward."""
    if softmax:
        inputs = jax.nn.softmax(inputs, axis=1)
    x = inputs.astype(jnp.float32)
    t = target.astype(jnp.float32)
    dice = (2.0 * x * t + _SMOOTH) / (x * x + t * t + _SMOOTH)
    return (1.0 - dice).astype(inputs.dtype)


if __name__ == "__main__":
    key = jax.random.PRNGKey(0)
    k1, k2 = jax.random.split(key)
    N, C, H, W = 2, 4, 16, 16

    # Scores (e.g. already-softmaxed predictions) and one-hot targets, both NCHW.
    inputs = jax.nn.softmax(
        jax.random.normal(k1, (N, C, H, W), dtype=jnp.float32), axis=1)
    labels = jax.random.randint(k2, (N, H, W), 0, C, dtype=jnp.int32)
    target = jnp.transpose(
        jax.nn.one_hot(labels, C, dtype=jnp.float32), (0, 3, 1, 2))

    out = dice_loss_class(inputs, target, weight=None, softmax=False)
    out = jax.block_until_ready(out)

    ref = _dice_loss_ref(inputs, target, softmax=False)
    np.testing.assert_allclose(np.asarray(out), np.asarray(ref),
                               rtol=1e-6, atol=1e-6)
    print("KERNEL_OK")
</pallas_src>

<mosaic_0001>
module attributes {stable_mosaic.version = 11 : i64} {
  func.func @_dice_loss_kernel(%arg0: i32, %arg1: memref<8x1024xf32, #tpu.memory_space<vmem>>, %arg2: memref<8x1024xf32, #tpu.memory_space<vmem>>, %arg3: memref<8x1024xf32, #tpu.memory_space<vmem>>) attributes {dimension_semantics = [#tpu.dimension_semantics<parallel>], iteration_bounds = array<i64: 1>, scalar_prefetch = 0 : i64, scratch_operands = 0 : i64, tpu.core_type = #tpu.core_type<tc>, window_params = [{transform_indices = @transform_0, window_bounds = array<i64: 8, 1024>}, {transform_indices = @transform_1, window_bounds = array<i64: 8, 1024>}, {transform_indices = @transform_2, window_bounds = array<i64: 8, 1024>}]} {
    %c0 = arith.constant 0 : index
    %c0_0 = arith.constant 0 : index
    %0 = vector.load %arg1[%c0, %c0_0] : memref<8x1024xf32, #tpu.memory_space<vmem>>, vector<8x1024xf32>
    %c0_1 = arith.constant 0 : index
    %c0_2 = arith.constant 0 : index
    %1 = vector.load %arg2[%c0_1, %c0_2] : memref<8x1024xf32, #tpu.memory_space<vmem>>, vector<8x1024xf32>
    %2 = arith.mulf %0, %1 : vector<8x1024xf32>
    %3 = arith.mulf %0, %0 : vector<8x1024xf32>
    %4 = arith.mulf %1, %1 : vector<8x1024xf32>
    %cst = arith.constant 2.000000e+00 : f32
    %5 = vector.broadcast %cst : f32 to vector<8x1024xf32>
    %6 = arith.mulf %5, %2 : vector<8x1024xf32>
    %cst_3 = arith.constant 9.99999971E-10 : f32
    %7 = vector.broadcast %cst_3 : f32 to vector<8x1024xf32>
    %8 = arith.addf %6, %7 : vector<8x1024xf32>
    %9 = arith.addf %3, %4 : vector<8x1024xf32>
    %cst_4 = arith.constant 9.99999971E-10 : f32
    %10 = vector.broadcast %cst_4 : f32 to vector<8x1024xf32>
    %11 = arith.addf %9, %10 : vector<8x1024xf32>
    %12 = arith.divf %8, %11 : vector<8x1024xf32>
    %cst_5 = arith.constant 1.000000e+00 : f32
    %13 = vector.broadcast %cst_5 : f32 to vector<8x1024xf32>
    %14 = arith.subf %13, %12 : vector<8x1024xf32>
    %c0_6 = arith.constant 0 : index
    %c0_7 = arith.constant 0 : index
    %15 = vector.load %arg3[%c0_6, %c0_7] : memref<8x1024xf32, #tpu.memory_space<vmem>>, vector<8x1024xf32>
    tpu.vector_store %arg3[%c0_6, %c0_7], %14 {strides = array<i32>} : memref<8x1024xf32, #tpu.memory_space<vmem>>, vector<8x1024xf32>,
    return
  }
  func.func @transform_0(%arg0: i32) -> (i32, i32) {
    %c0_i32 = arith.constant 0 : i32
    %c0_i32_0 = arith.constant 0 : i32
    return %arg0, %c0_i32 : i32, i32
  }
  func.func @transform_1(%arg0: i32) -> (i32, i32) {
    %c0_i32 = arith.constant 0 : i32
    %c0_i32_0 = arith.constant 0 : i32
    return %arg0, %c0_i32 : i32, i32
  }
  func.func @transform_2(%arg0: i32) -> (i32, i32) {
    %c0_i32 = arith.constant 0 : i32
    %c0_i32_0 = arith.constant 0 : i32
    return %arg0, %c0_i32 : i32, i32
  }
}

</mosaic_0001>

<llo_original>
// kernel: tpu_custom_call.1
$region0: #{tpu_custom_call.1}
  #allocation0 [shape = 'u32[]', space=smem, size = 0x4, offset = 0x4, fixed_abs, tag = 'smem constant byte address 0x4 - core index']
  #allocation1 [shape = 'u32[144,128]{1,0:T(1,128)}', space=vmem, size = 0x12000, scoped, tag = 'internal scratch']
  %s0 = inlined_call_operand.hbm [shape: f32[8,1024], index: 0, kind: input, shape index: {}]
  %s1 = inlined_call_operand.hbm [shape: f32[8,1024], index: 1, kind: input, shape index: {}]
  %s2 = inlined_call_operand.hbm [shape: f32[8,1024], index: 2, kind: output, shape index: {}]
  %s3 = sld [smem:[#allocation0]]
  $region26: #{tpu_custom_call.1} parent=0
    _
  %s5 = ssub.s32 1, %s3
  %s6 = scalar_select 0, %s5, %s3
  $region1: #{tpu_custom_call.1} parent=0
    #allocation2 [shape = 'u8[32768]{0}', space=vmem, size = 0x8000, scoped, tag = 'input window, operand 0, single buffered']
    #allocation3 [shape = 's32[1]{0}', space=sflag, size = 0x4, scoped, tag = 'scoped memory for tpu_custom_call.1']
    #allocation4 [shape = 's32[1]{0}', space=sflag, size = 0x4, scoped, tag = 'scoped memory for tpu_custom_call.1']
    #allocation5 [shape = 'u8[32768]{0}', space=vmem, size = 0x8000, scoped, tag = 'input window, operand 1, single buffered']
    #allocation6 [shape = 's32[1]{0}', space=sflag, size = 0x4, scoped, tag = 'scoped memory for tpu_custom_call.1']
    #allocation7 [shape = 'u8[32768]{0}', space=vmem, size = 0x8000, scoped, tag = 'output window, operand 0, single buffered']
    %7 = vsyncpa [#allocation3], 0
    %8 = vsyncpa [#allocation6], 0
    %9 = vsyncpa [#allocation4], 0
    // Predicated region
    $region2: #{tpu_custom_call.1} parent=1 // pred_check
      _
    $region3: #{tpu_custom_call.1} parent=1 // pred_check_branch
      %11 = sbr.rel (0) target = $region5
    $region4: #{tpu_custom_call.1} parent=1 // pred_region
      %s13 = ssub.s32 1024, 1024
      %14 = vsyncadd [#allocation3], %s13
      %s16 = sshll.u32 [#allocation2], 4
      %s17 = int_to_ptr.vmem [resolvable:$true] %s16
      %19 = dma.hbm_to_vmem [thread:$0]  %s0, 1024, %s17, [#allocation3]
    $region5: #{tpu_custom_call.1} parent=1 // pred_fallthru
      _
    // Predicated region
    $region6: #{tpu_custom_call.1} parent=1 // pred_check
      _
    $region7: #{tpu_custom_call.1} parent=1 // pred_check_branch
      %21 = sbr.rel (0) target = $region9
    $region8: #{tpu_custom_call.1} parent=1 // pred_region
      %s23 = ssub.s32 1024, 1024
      %24 = vsyncadd [#allocation6], %s23
      %s26 = sshll.u32 [#allocation5], 4
      %s27 = int_to_ptr.vmem [resolvable:$true] %s26
      %29 = dma.hbm_to_vmem [thread:$0]  %s1, 1024, %s27, [#allocation6]
    $region9: #{tpu_custom_call.1} parent=1 // pred_fallthru
      _
    // Predicated region
    $region10: #{tpu_custom_call.1} parent=1 // pred_check
      _
    $region11: #{tpu_custom_call.1} parent=1 // pred_check_branch
      %31 = sbr.rel (0) target = $region13
    $region12: #{tpu_custom_call.1} parent=1 // pred_region
      %32 = dma.done [#allocation3], 1024
    $region13: #{tpu_custom_call.1} parent=1 // pred_fallthru
      _
    // Predicated region
    $region14: #{tpu_custom_call.1} parent=1 // pred_check
      _
    $region15: #{tpu_custom_call.1} parent=1 // pred_check_branch
      %34 = sbr.rel (0) target = $region17
    $region16: #{tpu_custom_call.1} parent=1 // pred_region
      %35 = dma.done [#allocation6], 1024
    $region17: #{tpu_custom_call.1} parent=1 // pred_fallthru
      _
    %v36 = vld [vmem:[#allocation2] sm:$0xff]
    %v37 = vld [vmem:[#allocation2 + $0x8] sm:$0xff]
    %v38 = vld [vmem:[#allocation2 + $0x10] sm:$0xff]
    %v39 = vld [vmem:[#allocation2 + $0x18] sm:$0xff]
    %v40 = vld [vmem:[#allocation2 + $0x20] sm:$0xff]
    %v41 = vld [vmem:[#allocation2 + $0x28] sm:$0xff]
    %v42 = vld [vmem:[#allocation2 + $0x30] sm:$0xff]
    %v43 = vld [vmem:[#allocation2 + $0x38] sm:$0xff]
    %v44 = vld [vmem:[#allocation5] sm:$0xff]
    %v45 = vld [vmem:[#allocation5 + $0x8] sm:$0xff]
    %v46 = vld [vmem:[#allocation5 + $0x10] sm:$0xff]
    %v47 = vld [vmem:[#allocation5 + $0x18] sm:$0xff]
    %v48 = vld [vmem:[#allocation5 + $0x20] sm:$0xff]
    %v49 = vld [vmem:[#allocation5 + $0x28] sm:$0xff]
    %v50 = vld [vmem:[#allocation5 + $0x30] sm:$0xff]
    %v51 = vld [vmem:[#allocation5 + $0x38] sm:$0xff]
    %v52 = vmul.f32 %v36, %v44
    %v53 = vmul.f32 %v37, %v45
    %v54 = vmul.f32 %v38, %v46
    %v55 = vmul.f32 %v39, %v47
    %v56 = vmul.f32 %v40, %v48
    %v57 = vmul.f32 %v41, %v49
    %v58 = vmul.f32 %v42, %v50
    %v59 = vmul.f32 %v43, %v51
    %v60 = vmul.f32 %v36, %v36
    %v61 = vmul.f32 %v37, %v37
    %v62 = vmul.f32 %v38, %v38
    %v63 = vmul.f32 %v39, %v39
    %v64 = vmul.f32 %v40, %v40
    %v65 = vmul.f32 %v41, %v41
    %v66 = vmul.f32 %v42, %v42
    %v67 = vmul.f32 %v43, %v43
    %v68 = vmul.f32 %v44, %v44
    %v69 = vmul.f32 %v45, %v45
    %v70 = vmul.f32 %v46, %v46
    %v71 = vmul.f32 %v47, %v47
    %v72 = vmul.f32 %v48, %v48
    %v73 = vmul.f32 %v49, %v49
    %v74 = vmul.f32 %v50, %v50
    %v75 = vmul.f32 %v51, %v51
    %v76 = vmul.f32 %v52, 2.0
    %v77 = vmul.f32 %v53, 2.0
    %v78 = vmul.f32 %v54, 2.0
    %v79 = vmul.f32 %v55, 2.0
    %v80 = vmul.f32 %v56, 2.0
    %v81 = vmul.f32 %v57, 2.0
    %v82 = vmul.f32 %v58, 2.0
    %v83 = vmul.f32 %v59, 2.0
    %v84 = vadd.f32 %v76, 1e-09
    %v85 = vadd.f32 %v77, 1e-09
    %v86 = vadd.f32 %v78, 1e-09
    %v87 = vadd.f32 %v79, 1e-09
    %v88 = vadd.f32 %v80, 1e-09
    %v89 = vadd.f32 %v81, 1e-09
    %v90 = vadd.f32 %v82, 1e-09
    %v91 = vadd.f32 %v83, 1e-09
    %v92 = vadd.f32 %v60, %v68
    %v93 = vadd.f32 %v61, %v69
    %v94 = vadd.f32 %v62, %v70
    %v95 = vadd.f32 %v63, %v71
    %v96 = vadd.f32 %v64, %v72
    %v97 = vadd.f32 %v65, %v73
    %v98 = vadd.f32 %v66, %v74
    %v99 = vadd.f32 %v67, %v75
    %v100 = vadd.f32 %v92, 1e-09
    %v101 = vadd.f32 %v93, 1e-09
    %v102 = vadd.f32 %v94, 1e-09
    %v103 = vadd.f32 %v95, 1e-09
    %v104 = vadd.f32 %v96, 1e-09
    %v105 = vadd.f32 %v97, 1e-09
    %v106 = vadd.f32 %v98, 1e-09
    %v107 = vadd.f32 %v99, 1e-09
    %v108 = vrcp.pop %v100
    %v109 = vmul.f32 %v84, %v108
    %v110 = vrcp.pop %v101
    %v111 = vmul.f32 %v85, %v110
    %v112 = vrcp.pop %v102
    %v113 = vmul.f32 %v86, %v112
    %v114 = vrcp.pop %v103
    %v115 = vmul.f32 %v87, %v114
    %v116 = vrcp.pop %v104
    %v117 = vmul.f32 %v88, %v116
    %v118 = vrcp.pop %v105
    %v119 = vmul.f32 %v89, %v118
    %v120 = vrcp.pop %v106
    %v121 = vmul.f32 %v90, %v120
    %v122 = vrcp.pop %v107
    %v123 = vmul.f32 %v91, %v122
    %v124 = vsub.f32 1.0, %v109
    %v125 = vsub.f32 1.0, %v111
    %v126 = vsub.f32 1.0, %v113
    %v127 = vsub.f32 1.0, %v115
    %v128 = vsub.f32 1.0, %v117
    %v129 = vsub.f32 1.0, %v119
    %v130 = vsub.f32 1.0, %v121
    %v131 = vsub.f32 1.0, %v123
    %132 = vst [vmem:[#allocation7] sm:$0xff] %v124
    %133 = vst [vmem:[#allocation7 + $0x8] sm:$0xff] %v125
    %134 = vst [vmem:[#allocation7 + $0x10] sm:$0xff] %v126
    %135 = vst [vmem:[#allocation7 + $0x18] sm:$0xff] %v127
    %136 = vst [vmem:[#allocation7 + $0x20] sm:$0xff] %v128
    %137 = vst [vmem:[#allocation7 + $0x28] sm:$0xff] %v129
    %138 = vst [vmem:[#allocation7 + $0x30] sm:$0xff] %v130
    %139 = vst [vmem:[#allocation7 + $0x38] sm:$0xff] %v131
    // Predicated region
    $region18: #{tpu_custom_call.1} parent=1 // pred_check
      _
    $region19: #{tpu_custom_call.1} parent=1 // pred_check_branch
      %141 = sbr.rel (0) target = $region21
    $region20: #{tpu_custom_call.1} parent=1 // pred_region
      %s143 = ssub.s32 1024, 1024
      %144 = vsyncadd [#allocation4], %s143
      %s146 = sshll.u32 [#allocation7], 4
      %s147 = int_to_ptr.vmem [resolvable:$true] %s146
      %149 = dma.vmem_to_hbm [thread:$0]  %s147, 1024, %s2, [#allocation4]
    $region21: #{tpu_custom_call.1} parent=1 // pred_fallthru
      _
    // Predicated region
    $region22: #{tpu_custom_call.1} parent=1 // pred_check
      _
    $region23: #{tpu_custom_call.1} parent=1 // pred_check_branch
      %151 = sbr.rel (0) target = $region25
    $region24: #{tpu_custom_call.1} parent=1 // pred_region
      %152 = dma.done [#allocation4], 1024
    $region25: #{tpu_custom_call.1} parent=1 // pred_fallthru
      _
    %153 = vsyncpa [#allocation3], 1
    %154 = vsyncpa [#allocation6], 1
    %155 = vsyncpa [#allocation4], 1

</llo_original>
